<compile_context>
chip_gen: v7x
topology: tpu7x:2x2x1
jax: 0.10.0
libtpu: 0.0.40
codegen_flags: <defaults>
</compile_context>

<pallas_src>
import functools

import jax
import jax.numpy as jnp
from jax.experimental import pallas as pl
from jax.experimental.pallas import tpu as pltpu

BLOCK_EXPANSION = 1          # BasicBlock.expansion
_BN_EPS = 1e-5
_VMEM_LIMIT = 48 * 1024 * 1024


# ------------------------------ small helpers ------------------------------ #

def _fs(shape):
    """Full-array BlockSpec for a grid=(1,) call."""
    shape = tuple(int(s) for s in shape)
    return pl.BlockSpec(shape, lambda i: (0,) * len(shape))


def _fold_bn(p):
    """Eval-mode BatchNorm folded into (scale, bias), shape (1, C) f32."""
    scale = p['gamma'] / jnp.sqrt(p['var'] + _BN_EPS)
    bias = p['beta'] - p['mean'] * scale
    c = scale.shape[0]
    return (scale.reshape(1, c).astype(jnp.float32),
            bias.reshape(1, c).astype(jnp.float32))


def _compiler_params():
    return pltpu.CompilerParams(dimension_semantics=("arbitrary",),
                                vmem_limit_bytes=_VMEM_LIMIT)


# ------------------------------ stem kernel -------------------------------- #
# Fuses: conv3x3 s2 p1 + BN + ReLU  ->  conv1x1 + BN + ReLU -> conv1x1 + BN + ReLU
# The 3x3 stride-2 taps are pre-gathered (decimated, channel-concatenated) in
# the wrapper; the two 1x1 convs are plain matmuls on the same rows.

def _stem_kernel(p_ref, w1_ref, s1_ref, b1_ref, w2_ref, s2_ref, b2_ref,
                 w3_ref, s3_ref, b3_ref, o_ref):
    a = jnp.dot(p_ref[...].astype(jnp.bfloat16), w1_ref[...],
                preferred_element_type=jnp.float32)
    a = jnp.maximum(a * s1_ref[...] + b1_ref[...], 0.0)
    a = jnp.dot(a.astype(jnp.bfloat16), w2_ref[...],
                preferred_element_type=jnp.float32)
    a = jnp.maximum(a * s2_ref[...] + b2_ref[...], 0.0)
    a = jnp.dot(a.astype(jnp.bfloat16), w3_ref[...],
                preferred_element_type=jnp.float32)
    a = jnp.maximum(a * s3_ref[...] + b3_ref[...], 0.0)
    o_ref[...] = a.astype(o_ref.dtype)


def stem_forward(x_nhwc, stem_params):
    p1, p2, p3 = stem_params
    N, H, W, Cin = x_nhwc.shape
    Ho = (H - 1) // 2 + 1
    Wo = (W - 1) // 2 + 1
    M = N * Ho * Wo

    xp = jnp.pad(x_nhwc, ((0, 0), (1, 1), (1, 1), (0, 0)))
    taps = []
    for di in range(3):
        for dj in range(3):
            taps.append(xp[:, di:di + 2 * (Ho - 1) + 1:2,
                           dj:dj + 2 * (Wo - 1) + 1:2, :])
    pcat = jnp.concatenate(taps, axis=-1).reshape(M, 9 * Cin)

    c1 = p1['w'].shape[-1]
    c2 = p2['w'].shape[-1]
    c3 = p3['w'].shape[-1]
    w1 = p1['w'].reshape(9 * Cin, c1).astype(jnp.bfloat16)
    s1, b1 = _fold_bn(p1)
    w2 = p2['w'].reshape(c1, c2).astype(jnp.bfloat16)
    s2, b2 = _fold_bn(p2)
    w3 = p3['w'].reshape(c2, c3).astype(jnp.bfloat16)
    s3, b3 = _fold_bn(p3)

    args = [pcat, w1, s1, b1, w2, s2, b2, w3, s3, b3]
    flops = 2 * M * (9 * Cin * c1 + c1 * c2 + c2 * c3)
    bytes_acc = sum(int(a.size) * a.dtype.itemsize for a in args) + M * c3 * 4

    out = pl.pallas_call(
        _stem_kernel,
        out_shape=jax.ShapeDtypeStruct((M, c3), jnp.float32),
        grid=(1,),
        in_specs=[_fs(a.shape) for a in args],
        out_specs=_fs((M, c3)),
        compiler_params=_compiler_params(),
        cost_estimate=pl.CostEstimate(flops=int(flops), transcendentals=0,
                                      bytes_accessed=int(bytes_acc)),
    )(*args)
    return out.reshape(N, Ho, Wo, c3)


# --------------------------- fused BasicBlock kernel ------------------------ #
# Flat layout: NHWC tensors are flattened to (rows = N*Hpad*Wpad, lanes = C),
# zero on the padded border, plus `halo = Wpad+1` zero rows at each end so that
# the 9 taps of a stride-1 3x3 conv are constant-row-shifted slices.

def _basic_block_kernel(*refs, stride, has_down, rc, halo, wop, cin):
    if has_down:
        (x_ref, w1_ref, s1_ref, b1_ref, w2_ref, s2_ref, b2_ref,
         wd_ref, sd_ref, bd_ref, mask_ref, out_ref, act1_ref) = refs
    else:
        (x_ref, w1_ref, s1_ref, b1_ref, w2_ref, s2_ref, b2_ref,
         mask_ref, out_ref, act1_ref) = refs

    cmid = out_ref.shape[1]

    # ---- conv1 (3x3, stride `stride`) + BN + ReLU ---------------------------
    if stride == 1:
        acc1 = jnp.zeros((rc, cmid), jnp.float32)
        for t in range(9):
            di, dj = t // 3, t % 3
            s = halo + (di - 1) * wop + (dj - 1)           # static shift
            lhs = x_ref[s:s + rc, :].astype(jnp.bfloat16)
            acc1 = acc1 + jnp.dot(lhs, w1_ref[t],
                                  preferred_element_type=jnp.float32)
    else:
        # taps pre-gathered & channel-concatenated on the output grid
        acc1 = jnp.dot(x_ref[...].astype(jnp.bfloat16), w1_ref[...],
                       preferred_element_type=jnp.float32)
    a1 = jnp.maximum(acc1 * s1_ref[...] + b1_ref[...], 0.0)
    a1 = a1 * mask_ref[...]                 # zero the padded-grid border rows

    # intermediate activation lives only in VMEM (never touches HBM)
    act1_ref[...] = jnp.zeros(act1_ref.shape, act1_ref.dtype)
    act1_ref[halo:halo + rc, :] = a1.astype(act1_ref.dtype)

    # ---- identity / 1x1 downsample (+BN, no ReLU) ---------------------------
    if has_down:
        if stride == 1:
            dlhs = x_ref[halo:halo + rc, :].astype(jnp.bfloat16)
        else:
            dlhs = x_ref[:, 4 * cin:5 * cin].astype(jnp.bfloat16)  # centre tap
        identity = (jnp.dot(dlhs, wd_ref[...],
                            preferred_element_type=jnp.float32)
                    * sd_ref[...] + bd_ref[...])
    else:
        identity = x_ref[halo:halo + rc, :].astype(jnp.float32)

    # ---- conv2 (3x3, stride 1) + BN + residual + ReLU -----------------------
    acc2 = jnp.zeros((rc, cmid), jnp.float32)
    for t in range(9):
        di, dj = t // 3, t % 3
        s = halo + (di - 1) * wop + (dj - 1)
        lhs = act1_ref[s:s + rc, :].astype(jnp.bfloat16)
        acc2 = acc2 + jnp.dot(lhs, w2_ref[t],
                              preferred_element_type=jnp.float32)
    y = jnp.maximum(acc2 * s2_ref[...] + b2_ref[...] + identity, 0.0)
    out_ref[...] = y.astype(out_ref.dtype)


def basic_block_forward(x_nhwc, p):
    stride = p['stride']
    has_down = p['down'] is not None
    N, H, W, Cin = x_nhwc.shape
    Ho = (H - 1) // stride + 1
    Wo = (W - 1) // stride + 1
    Hop, Wop = Ho + 2, Wo + 2
    rc = N * Hop * Wop
    halo = Wop + 1
    Cmid = p['conv1']['w'].shape[-1]

    xp = jnp.pad(x_nhwc, ((0, 0), (1, 1), (1, 1), (0, 0)))
    if stride == 1:
        # flat zero-bordered input + halo rows; taps read in-kernel via shifts
        x_in = jnp.pad(xp.reshape(N * Hop * Wop, Cin), ((halo, halo), (0, 0)))
        w1 = p['conv1']['w'].reshape(9, Cin, Cmid).astype(jnp.bfloat16)
    else:
        # gather the 9 decimated taps onto the (zero-bordered) output grid
        taps = []
        for di in range(3):
            for dj in range(3):
                taps.append(xp[:, di:di + 2 * (Ho - 1) + 1:2,
                               dj:dj + 2 * (Wo - 1) + 1:2, :])
        t = jnp.concatenate(taps, axis=-1)                   # (N, Ho, Wo, 9*Cin)
        t = jnp.pad(t, ((0, 0), (1, 1), (1, 1), (0, 0)))     # output padded grid
        x_in = t.reshape(rc, 9 * Cin)
        w1 = p['conv1']['w'].reshape(9 * Cin, Cmid).astype(jnp.bfloat16)
    s1, b1 = _fold_bn(p['conv1'])
    w2 = p['conv2']['w'].reshape(9, Cmid, Cmid).astype(jnp.bfloat16)
    s2, b2 = _fold_bn(p['conv2'])

    # interior mask of the output padded grid (0 on the border ring)
    hh = jnp.arange(Hop)
    ww = jnp.arange(Wop)
    m2 = ((hh[:, None] > 0) & (hh[:, None] < Hop - 1)
          & (ww[None, :] > 0) & (ww[None, :] < Wop - 1))
    mask = jnp.broadcast_to(m2[None], (N, Hop, Wop)).reshape(rc, 1)
    mask = mask.astype(jnp.float32)

    args = [x_in, w1, s1, b1, w2, s2, b2]
    if has_down:
        wd = p['down']['w'].reshape(Cin, Cmid).astype(jnp.bfloat16)
        sd, bd = _fold_bn(p['down'])
        args += [wd, sd, bd]
    args.append(mask)

    kernel = functools.partial(_basic_block_kernel, stride=stride,
                               has_down=has_down, rc=rc, halo=halo,
                               wop=Wop, cin=Cin)
    flops = 2 * rc * (9 * Cin * Cmid + 9 * Cmid * Cmid
                      + (Cin * Cmid if has_down else 0))
    bytes_acc = sum(int(a.size) * a.dtype.itemsize for a in args) + rc * Cmid * 4

    out = pl.pallas_call(
        kernel,
        out_shape=jax.ShapeDtypeStruct((rc, Cmid), jnp.float32),
        grid=(1,),
        in_specs=[_fs(a.shape) for a in args],
        out_specs=_fs((rc, Cmid)),
        scratch_shapes=[pltpu.VMEM((2 * halo + rc, Cmid), jnp.float32)],
        compiler_params=_compiler_params(),
        cost_estimate=pl.CostEstimate(flops=int(flops), transcendentals=0,
                                      bytes_accessed=int(bytes_acc)),
    )(*args)

    out = out.reshape(N, Hop, Wop, Cmid)[:, 1:Hop - 1, 1:Wop - 1, :]
    return out


# ------------------------------ maxpool (JAX) ------------------------------ #
# Pairwise-max tree over the 9 strided views; XLA fuses it (no 9x HBM stack).

def maxpool_3x3_s2_p1(x):
    N, H, W, C = x.shape
    Ho = (H - 1) // 2 + 1
    Wo = (W - 1) // 2 + 1
    xp = jnp.pad(x, ((0, 0), (1, 1), (1, 1), (0, 0)),
                 constant_values=-jnp.inf)
    out = None
    for di in range(3):
        for dj in range(3):
            tap = xp[:, di:di + 2 * (Ho - 1) + 1:2,
                     dj:dj + 2 * (Wo - 1) + 1:2, :]
            out = tap if out is None else jnp.maximum(out, tap)
    return out


# ------------------------------ parameter init ------------------------------ #

def init_conv_bn(key, cin, cout, k):
    k1, k2, k3, k4, k5 = jax.random.split(key, 5)
    return {
        'w': 0.1 * jax.random.normal(k1, (k, k, cin, cout), jnp.float32),
        'gamma': 1.0 + 0.1 * jax.random.normal(k2, (cout,), jnp.float32),
        'beta': 0.1 * jax.random.normal(k3, (cout,), jnp.float32),
        'mean': 0.1 * jax.random.normal(k4, (cout,), jnp.float32),
        'var': jax.random.uniform(k5, (cout,), jnp.float32, 0.5, 1.5),
    }


def init_basic_block(key, inplanes, planes, stride):
    k1, k2, k3 = jax.random.split(key, 3)
    p = {
        'conv1': init_conv_bn(k1, inplanes, planes, 3),
        'conv2': init_conv_bn(k2, planes, planes, 3),
        'down': None,
        'stride': stride,
    }
    if stride != 1 or inplanes != planes * BLOCK_EXPANSION:
        p['down'] = init_conv_bn(k3, inplanes, planes * BLOCK_EXPANSION, 1)
    return p


def init_residual_net(key, in_channel, layers):
    keys = jax.random.split(key, 4)
    params = {
        'stem': [
            init_conv_bn(keys[0], in_channel, 64, 3),
            init_conv_bn(keys[1], 64, 64, 1),
            init_conv_bn(keys[2], 64, 128, 1),
        ]
    }
    inplanes = 128
    lkeys = jax.random.split(keys[3], 4)
    layer_params = []
    for li, (planes, nblocks, stride) in enumerate(
            zip((64, 128, 256, 512), layers, (1, 2, 2, 2))):
        bkeys = jax.random.split(lkeys[li], nblocks)
        blocks = [init_basic_block(bkeys[0], inplanes, planes, stride)]
        inplanes = planes * BLOCK_EXPANSION
        for b in range(1, nblocks):
            blocks.append(init_basic_block(bkeys[b], inplanes, planes, 1))
        layer_params.append(blocks)
    params['layers'] = layer_params
    return params


# --------------------------------- forward ---------------------------------- #

def residual_net_forward(params, x_nchw):
    """x_nchw: (bs, c, h, w) -> dict of NCHW feature maps, as in the reference."""
    x = jnp.transpose(x_nchw, (0, 2, 3, 1)).astype(jnp.float32)  # NCHW -> NHWC
    x = stem_forward(x, params['stem'])          # fused conv3x3+1x1+1x1 (+BN/ReLU)
    x = maxpool_3x3_s2_p1(x)
    out = {}
    names = ['resnet_layer1', 'resnet_layer2', 'resnet_layer3', 'resnet_layer4']
    for name, blocks in zip(names, params['layers']):
        for bp in blocks:
            x = basic_block_forward(x, bp)       # one pallas_call per BasicBlock
        out[name] = jnp.transpose(x, (0, 3, 1, 2))  # NHWC -> NCHW
    return out


if __name__ == "__main__":
    key = jax.random.PRNGKey(0)
    kx, kp = jax.random.split(key)
    x = jax.random.normal(kx, (2, 4, 16, 16), jnp.float32)   # (bs, c, h, w)
    # block = BasicBlock (expansion=1), layers = [1, 1, 1, 1]
    params = init_residual_net(kp, in_channel=4, layers=[1, 1, 1, 1])

    out = residual_net_forward(params, x)
    jax.block_until_ready(out)

    assert out['resnet_layer1'].shape == (2, 64, 4, 4)
    assert out['resnet_layer2'].shape == (2, 128, 2, 2)
    assert out['resnet_layer3'].shape == (2, 256, 1, 1)
    assert out['resnet_layer4'].shape == (2, 512, 1, 1)
    for v in out.values():
        assert bool(jnp.all(jnp.isfinite(v)))
    print("KERNEL_OK")
</pallas_src>

<mosaic_0001>
module attributes {stable_mosaic.version = 11 : i64} {
  func.func @_stem_kernel(%arg0: i32, %arg1: memref<128x36xf32, #tpu.memory_space<vmem>>, %arg2: memref<36x64xbf16, #tpu.memory_space<vmem>>, %arg3: memref<1x64xf32, #tpu.memory_space<vmem>>, %arg4: memref<1x64xf32, #tpu.memory_space<vmem>>, %arg5: memref<64x64xbf16, #tpu.memory_space<vmem>>, %arg6: memref<1x64xf32, #tpu.memory_space<vmem>>, %arg7: memref<1x64xf32, #tpu.memory_space<vmem>>, %arg8: memref<64x128xbf16, #tpu.memory_space<vmem>>, %arg9: memref<1x128xf32, #tpu.memory_space<vmem>>, %arg10: memref<1x128xf32, #tpu.memory_space<vmem>>, %arg11: memref<128x128xf32, #tpu.memory_space<vmem>>) attributes {dimension_semantics = [#tpu.dimension_semantics<arbitrary>], iteration_bounds = array<i64: 1>, scalar_prefetch = 0 : i64, scratch_operands = 0 : i64, tpu.core_type = #tpu.core_type<tc>, window_params = [{pipeline_mode = #tpu.pipeline_mode<synchronous>, transform_indices = @transform_0, window_bounds = array<i64: 128, 36>}, {pipeline_mode = #tpu.pipeline_mode<synchronous>, transform_indices = @transform_1, window_bounds = array<i64: 36, 64>}, {pipeline_mode = #tpu.pipeline_mode<synchronous>, transform_indices = @transform_2, window_bounds = array<i64: 1, 64>}, {pipeline_mode = #tpu.pipeline_mode<synchronous>, transform_indices = @transform_3, window_bounds = array<i64: 1, 64>}, {pipeline_mode = #tpu.pipeline_mode<synchronous>, transform_indices = @transform_4, window_bounds = array<i64: 64, 64>}, {pipeline_mode = #tpu.pipeline_mode<synchronous>, transform_indices = @transform_5, window_bounds = array<i64: 1, 64>}, {pipeline_mode = #tpu.pipeline_mode<synchronous>, transform_indices = @transform_6, window_bounds = array<i64: 1, 64>}, {pipeline_mode = #tpu.pipeline_mode<synchronous>, transform_indices = @transform_7, window_bounds = array<i64: 64, 128>}, {pipeline_mode = #tpu.pipeline_mode<synchronous>, transform_indices = @transform_8, window_bounds = array<i64: 1, 128>}, {pipeline_mode = #tpu.pipeline_mode<synchronous>, transform_indices = @transform_9, window_bounds = array<i64: 1, 128>}, {pipeline_mode = #tpu.pipeline_mode<synchronous>, transform_indices = @transform_10, window_bounds = array<i64: 128, 128>}]} {
    %c0 = arith.constant 0 : index
    %c0_0 = arith.constant 0 : index
    %0 = vector.load %arg1[%c0, %c0_0] : memref<128x36xf32, #tpu.memory_space<vmem>>, vector<128x36xf32>
    %1 = arith.truncf %0 : vector<128x36xf32> to vector<128x36xbf16>
    %c0_1 = arith.constant 0 : index
    %c0_2 = arith.constant 0 : index
    %2 = vector.load %arg2[%c0_1, %c0_2] : memref<36x64xbf16, #tpu.memory_space<vmem>>, vector<36x64xbf16>
    %cst = arith.constant dense<0.000000e+00> : vector<128x64xf32>
    %3 = tpu.matmul %1, %2, %cst {dimension_numbers = #tpu.dot_dimension_numbers<[1], [0], [0], [1], [0, 0, 1, 1], [], []>} : vector<128x36xbf16>, vector<36x64xbf16>, vector<128x64xf32> -> vector<128x64xf32>
    %c0_3 = arith.constant 0 : index
    %c0_4 = arith.constant 0 : index
    %4 = vector.load %arg3[%c0_3, %c0_4] : memref<1x64xf32, #tpu.memory_space<vmem>>, vector<1x64xf32>
    %5 = vector.broadcast %4 : vector<1x64xf32> to vector<128x64xf32>
    %6 = arith.mulf %3, %5 : vector<128x64xf32>
    %c0_5 = arith.constant 0 : index
    %c0_6 = arith.constant 0 : index
    %7 = vector.load %arg4[%c0_5, %c0_6] : memref<1x64xf32, #tpu.memory_space<vmem>>, vector<1x64xf32>
    %8 = vector.broadcast %7 : vector<1x64xf32> to vector<128x64xf32>
    %9 = arith.addf %6, %8 : vector<128x64xf32>
    %cst_7 = arith.constant 0.000000e+00 : f32
    %10 = vector.broadcast %cst_7 : f32 to vector<128x64xf32>
    %11 = arith.maximumf %9, %10 : vector<128x64xf32>
    %12 = arith.truncf %11 : vector<128x64xf32> to vector<128x64xbf16>
    %c0_8 = arith.constant 0 : index
    %c0_9 = arith.constant 0 : index
    %13 = vector.load %arg5[%c0_8, %c0_9] : memref<64x64xbf16, #tpu.memory_space<vmem>>, vector<64x64xbf16>
    %cst_10 = arith.constant dense<0.000000e+00> : vector<128x64xf32>
    %14 = tpu.matmul %12, %13, %cst_10 {dimension_numbers = #tpu.dot_dimension_numbers<[1], [0], [0], [1], [0, 0, 1, 1], [], []>} : vector<128x64xbf16>, vector<64x64xbf16>, vector<128x64xf32> -> vector<128x64xf32>
    %c0_11 = arith.constant 0 : index
    %c0_12 = arith.constant 0 : index
    %15 = vector.load %arg6[%c0_11, %c0_12] : memref<1x64xf32, #tpu.memory_space<vmem>>, vector<1x64xf32>
    %16 = vector.broadcast %15 : vector<1x64xf32> to vector<128x64xf32>
    %17 = arith.mulf %14, %16 : vector<128x64xf32>
    %c0_13 = arith.constant 0 : index
    %c0_14 = arith.constant 0 : index
    %18 = vector.load %arg7[%c0_13, %c0_14] : memref<1x64xf32, #tpu.memory_space<vmem>>, vector<1x64xf32>
    %19 = vector.broadcast %18 : vector<1x64xf32> to vector<128x64xf32>
    %20 = arith.addf %17, %19 : vector<128x64xf32>
    %cst_15 = arith.constant 0.000000e+00 : f32
    %21 = vector.broadcast %cst_15 : f32 to vector<128x64xf32>
    %22 = arith.maximumf %20, %21 : vector<128x64xf32>
    %23 = arith.truncf %22 : vector<128x64xf32> to vector<128x64xbf16>
    %c0_16 = arith.constant 0 : index
    %c0_17 = arith.constant 0 : index
    %24 = vector.load %arg8[%c0_16, %c0_17] : memref<64x128xbf16, #tpu.memory_space<vmem>>, vector<64x128xbf16>
    %cst_18 = arith.constant dense<0.000000e+00> : vector<128x128xf32>
    %25 = tpu.matmul %23, %24, %cst_18 {dimension_numbers = #tpu.dot_dimension_numbers<[1], [0], [0], [1], [0, 0, 1, 1], [], []>} : vector<128x64xbf16>, vector<64x128xbf16>, vector<128x128xf32> -> vector<128x128xf32>
    %c0_19 = arith.constant 0 : index
    %c0_20 = arith.constant 0 : index
    %26 = vector.load %arg9[%c0_19, %c0_20] : memref<1x128xf32, #tpu.memory_space<vmem>>, vector<1x128xf32>
    %27 = vector.broadcast %26 : vector<1x128xf32> to vector<128x128xf32>
    %28 = arith.mulf %25, %27 : vector<128x128xf32>
    %c0_21 = arith.constant 0 : index
    %c0_22 = arith.constant 0 : index
    %29 = vector.load %arg10[%c0_21, %c0_22] : memref<1x128xf32, #tpu.memory_space<vmem>>, vector<1x128xf32>
    %30 = vector.broadcast %29 : vector<1x128xf32> to vector<128x128xf32>
    %31 = arith.addf %28, %30 : vector<128x128xf32>
    %cst_23 = arith.constant 0.000000e+00 : f32
    %32 = vector.broadcast %cst_23 : f32 to vector<128x128xf32>
    %33 = arith.maximumf %31, %32 : vector<128x128xf32>
    %c0_24 = arith.constant 0 : index
    %c0_25 = arith.constant 0 : index
    %34 = vector.load %arg11[%c0_24, %c0_25] : memref<128x128xf32, #tpu.memory_space<vmem>>, vector<128x128xf32>
    tpu.vector_store %arg11[%c0_24, %c0_25], %33 {strides = array<i32>} : memref<128x128xf32, #tpu.memory_space<vmem>>, vector<128x128xf32>,
    return
  }
  func.func @transform_0(%arg0: i32) -> (i32, i32) {
    %c0_i32 = arith.constant 0 : i32
    %c0_i32_0 = arith.constant 0 : i32
    %c0_i32_1 = arith.constant 0 : i32
    return %c0_i32, %c0_i32_0 : i32, i32
  }
  func.func @transform_1(%arg0: i32) -> (i32, i32) {
    %c0_i32 = arith.constant 0 : i32
    %c0_i32_0 = arith.constant 0 : i32
    %c0_i32_1 = arith.constant 0 : i32
    return %c0_i32, %c0_i32_0 : i32, i32
  }
  func.func @transform_2(%arg0: i32) -> (i32, i32) {
    %c0_i32 = arith.constant 0 : i32
    %c0_i32_0 = arith.constant 0 : i32
    %c0_i32_1 = arith.constant 0 : i32
    return %c0_i32, %c0_i32_0 : i32, i32
  }
  func.func @transform_3(%arg0: i32) -> (i32, i32) {
    %c0_i32 = arith.constant 0 : i32
    %c0_i32_0 = arith.constant 0 : i32
    %c0_i32_1 = arith.constant 0 : i32
    return %c0_i32, %c0_i32_0 : i32, i32
  }
  func.func @transform_4(%arg0: i32) -> (i32, i32) {
    %c0_i32 = arith.constant 0 : i32
    %c0_i32_0 = arith.constant 0 : i32
    %c0_i32_1 = arith.constant 0 : i32
    return %c0_i32, %c0_i32_0 : i32, i32
  }
  func.func @transform_5(%arg0: i32) -> (i32, i32) {
    %c0_i32 = arith.constant 0 : i32
    %c0_i32_0 = arith.constant 0 : i32
    %c0_i32_1 = arith.constant 0 : i32
    return %c0_i32, %c0_i32_0 : i32, i32
  }
  func.func @transform_6(%arg0: i32) -> (i32, i32) {
    %c0_i32 = arith.constant 0 : i32
    %c0_i32_0 = arith.constant 0 : i32
    %c0_i32_1 = arith.constant 0 : i32
    return %c0_i32, %c0_i32_0 : i32, i32
  }
  func.func @transform_7(%arg0: i32) -> (i32, i32) {
    %c0_i32 = arith.constant 0 : i32
    %c0_i32_0 = arith.constant 0 : i32
    %c0_i32_1 = arith.constant 0 : i32
    return %c0_i32, %c0_i32_0 : i32, i32
  }
  func.func @transform_8(%arg0: i32) -> (i32, i32) {
    %c0_i32 = arith.constant 0 : i32
    %c0_i32_0 = arith.constant 0 : i32
    %c0_i32_1 = arith.constant 0 : i32
    return %c0_i32, %c0_i32_0 : i32, i32
  }
  func.func @transform_9(%arg0: i32) -> (i32, i32) {
    %c0_i32 = arith.constant 0 : i32
    %c0_i32_0 = arith.constant 0 : i32
    %c0_i32_1 = arith.constant 0 : i32
    return %c0_i32, %c0_i32_0 : i32, i32
  }
  func.func @transform_10(%arg0: i32) -> (i32, i32) {
    %c0_i32 = arith.constant 0 : i32
    %c0_i32_0 = arith.constant 0 : i32
    %c0_i32_1 = arith.constant 0 : i32
    return %c0_i32, %c0_i32_0 : i32, i32
  }
}

</mosaic_0001>

<llo_original>
// kernel: tpu_custom_call.1
$region0: #{tpu_custom_call.1}
  #allocation0 [shape = 'u32[]', space=smem, size = 0x4, offset = 0x4, fixed_abs, tag = 'smem constant byte address 0x4 - core index']
  #allocation1 [shape = 'u32[144,128]{1,0:T(1,128)}', space=vmem, size = 0x12000, scoped, tag = 'internal scratch']
  %s0 = inlined_call_operand.vmem [shape: f32[128,36], index: 0, kind: input, shape index: {}]
  %s1 = inlined_call_operand.vmem [shape: bf16[36,64], index: 1, kind: input, shape index: {}]
  %s2 = inlined_call_operand.vmem [shape: f32[1,64], index: 2, kind: input, shape index: {}]
  %s3 = inlined_call_operand.vmem [shape: f32[1,64], index: 3, kind: input, shape index: {}]
  %s4 = inlined_call_operand.vmem [shape: bf16[64,64], index: 4, kind: input, shape index: {}]
  %s5 = inlined_call_operand.vmem [shape: f32[1,64], index: 5, kind: input, shape index: {}]
  %s6 = inlined_call_operand.vmem [shape: f32[1,64], index: 6, kind: input, shape index: {}]
  %s7 = inlined_call_operand.vmem [shape: bf16[64,128], index: 7, kind: input, shape index: {}]
  %s8 = inlined_call_operand.vmem [shape: f32[1,128], index: 8, kind: input, shape index: {}]
  %s9 = inlined_call_operand.vmem [shape: f32[1,128], index: 9, kind: input, shape index: {}]
  %s10 = inlined_call_operand.hbm [shape: f32[128,128], index: 10, kind: output, shape index: {}]
  %s11 = sld [smem:[#allocation0]]
  $region50: #{tpu_custom_call.1} parent=0
    _
  %s13 = ssub.s32 1, %s11
  %s14 = scalar_select 0, %s13, %s11
  $region1: #{tpu_custom_call.1} parent=0
    #allocation2 [shape = 'u8[65536]{0}', space=vmem, size = 0x10000, scoped, tag = 'output window, operand 0, single buffered']
    #allocation3 [shape = 's32[1]{0}', space=sflag, size = 0x4, scoped, tag = 'scoped memory for tpu_custom_call.1']
    %15 = vsyncpa [#allocation3], 0
    // Predicated region
    $region2: #{tpu_custom_call.1} parent=1 // pred_check
      _
    $region3: #{tpu_custom_call.1} parent=1 // pred_check_branch
      %17 = sbr.rel (0) target = $region5
    $region4: #{tpu_custom_call.1} parent=1 // pred_region
      _
    $region5: #{tpu_custom_call.1} parent=1 // pred_fallthru
      _
    // Predicated region
    $region6: #{tpu_custom_call.1} parent=1 // pred_check
      _
    $region7: #{tpu_custom_call.1} parent=1 // pred_check_branch
      %19 = sbr.rel (0) target = $region9
    $region8: #{tpu_custom_call.1} parent=1 // pred_region
      _
    $region9: #{tpu_custom_call.1} parent=1 // pred_fallthru
      _
    // Predicated region
    $region10: #{tpu_custom_call.1} parent=1 // pred_check
      _
    $region11: #{tpu_custom_call.1} parent=1 // pred_check_branch
      %21 = sbr.rel (0) target = $region13
    $region12: #{tpu_custom_call.1} parent=1 // pred_region
      _
    $region13: #{tpu_custom_call.1} parent=1 // pred_fallthru
      _
    // Predicated region
    $region14: #{tpu_custom_call.1} parent=1 // pred_check
      _
    $region15: #{tpu_custom_call.1} parent=1 // pred_check_branch
      %23 = sbr.rel (0) target = $region17
    $region16: #{tpu_custom_call.1} parent=1 // pred_region
      _
    $region17: #{tpu_custom_call.1} parent=1 // pred_fallthru
      _
    // Predicated region
    $region18: #{tpu_custom_call.1} parent=1 // pred_check
      _
    $region19: #{tpu_custom_call.1} parent=1 // pred_check_branch
      %25 = sbr.rel (0) target = $region21
    $region20: #{tpu_custom_call.1} parent=1 // pred_region
      _
    $region21: #{tpu_custom_call.1} parent=1 // pred_fallthru
      _
    // Predicated region
    $region22: #{tpu_custom_call.1} parent=1 // pred_check
      _
    $region23: #{tpu_custom_call.1} parent=1 // pred_check_branch
      %27 = sbr.rel (0) target = $region25
    $region24: #{tpu_custom_call.1} parent=1 // pred_region
      _
    $region25: #{tpu_custom_call.1} parent=1 // pred_fallthru
      _
    // Predicated region
    $region26: #{tpu_custom_call.1} parent=1 // pred_check
      _
    $region27: #{tpu_custom_call.1} parent=1 // pred_check_branch
      %29 = sbr.rel (0) target = $region29
    $region28: #{tpu_custom_call.1} parent=1 // pred_region
      _
    $region29: #{tpu_custom_call.1} parent=1 // pred_fallthru
      _
    // Predicated region
    $region30: #{tpu_custom_call.1} parent=1 // pred_check
      _
    $region31: #{tpu_custom_call.1} parent=1 // pred_check_branch
      %31 = sbr.rel (0) target = $region33
    $region32: #{tpu_custom_call.1} parent=1 // pred_region
      _
    $region33: #{tpu_custom_call.1} parent=1 // pred_fallthru
      _
    // Predicated region
    $region34: #{tpu_custom_call.1} parent=1 // pred_check
      _
    $region35: #{tpu_custom_call.1} parent=1 // pred_check_branch
      %33 = sbr.rel (0) target = $region37
    $region36: #{tpu_custom_call.1} parent=1 // pred_region
      _
    $region37: #{tpu_custom_call.1} parent=1 // pred_fallthru
      _
    // Predicated region
    $region38: #{tpu_custom_call.1} parent=1 // pred_check
      _
    $region39: #{tpu_custom_call.1} parent=1 // pred_check_branch
      %35 = sbr.rel (0) target = $region41
    $region40: #{tpu_custom_call.1} parent=1 // pred_region
      _
    $region41: #{tpu_custom_call.1} parent=1 // pred_fallthru
      _
    %v37 = vld [vmem:[%s0] sm:$0xff]
    %v38 = vld [vmem:[%s0 + $0x8] sm:$0xff]
    %v39 = vld [vmem:[%s0 + $0x10] sm:$0xff]
    %v40 = vld [vmem:[%s0 + $0x18] sm:$0xff]
    %v41 = vld [vmem:[%s0 + $0x20] sm:$0xff]
    %v42 = vld [vmem:[%s0 + $0x28] sm:$0xff]
    %v43 = vld [vmem:[%s0 + $0x30] sm:$0xff]
    %v44 = vld [vmem:[%s0 + $0x38] sm:$0xff]
    %v45 = vld [vmem:[%s0 + $0x40] sm:$0xff]
    %v46 = vld [vmem:[%s0 + $0x48] sm:$0xff]
    %v47 = vld [vmem:[%s0 + $0x50] sm:$0xff]
    %v48 = vld [vmem:[%s0 + $0x58] sm:$0xff]
    %v49 = vld [vmem:[%s0 + $0x60] sm:$0xff]
    %v50 = vld [vmem:[%s0 + $0x68] sm:$0xff]
    %v51 = vld [vmem:[%s0 + $0x70] sm:$0xff]
    %v52 = vld [vmem:[%s0 + $0x78] sm:$0xff]
    %v53 = vpack.c.bf16 %v38, %v37
    %v54 = vpack.c.bf16 %v40, %v39
    %v55 = vpack.c.bf16 %v42, %v41
    %v56 = vpack.c.bf16 %v44, %v43
    %v57 = vpack.c.bf16 %v46, %v45
    %v58 = vpack.c.bf16 %v48, %v47
    %v59 = vpack.c.bf16 %v50, %v49
    %v60 = vpack.c.bf16 %v52, %v51
    %v61 = vld [vmem:[%s1] sm:$0xf]
    %v62 = vld [vmem:[%s1 + $0x4] sm:$0xf]
    %v63 = vld [vmem:[%s1 + $0x8] sm:$0xf]
    %v64 = vld [vmem:[%s1 + $0xc] sm:$0xf]
    %v65 = vld [vmem:[%s1 + $0x10] sm:$0x3]
    %v71 = vunpack.c.l.b16 %v61
    %v72 = vunpack.c.l.b16 %v62
    %v73 = vunpack.c.l.b16 %v63
    %v74 = vunpack.c.l.b16 %v64
    %v75 = vunpack.c.l.b16 %v65
    %v76 = vpack.c.b16 %v72, %v71
    %v77 = vpack.c.b16 %v74, %v73
    %v78 = vpack.c.b16 %v75, %v75
    %vm81 = vcmask 293888
    %v83 = vsel %vm81, %v53, 0
    %v86 = vsel %vm81, %v54, 0
    %v89 = vsel %vm81, %v55, 0
    %v92 = vsel %vm81, %v56, 0
    %v95 = vsel %vm81, %v57, 0
    %v98 = vsel %vm81, %v58, 0
    %v101 = vsel %vm81, %v59, 0
    %v104 = vsel %vm81, %v60, 0
    %vm106 = vcmask 1041408
    %v108 = vsel %vm106, %v78, 0
    %110 = vmatprep.subr.bf16.mxu0 0
    %111 = vmatpush1.bf16.msra.mxu0 %v76
    %112 = vmatprep.subr.bf16.mxu0 0
    %113 = vmatpush1.bf16.msra.mxu0 %v77
    %114 = vmatprep.subr.bf16.mxu0 0
    %115 = vmatpush1.bf16.msra.mxu0 %v108
    %116 = vmatprep.subr.bf16.mxu0 0
    %117 = vmatpush1.bf16.msra.mxu0 0
    %118 = vmatprep.subr.bf16.mxu0 0
    %119 = vmatpush1.bf16.msra.mxu0 0
    %120 = vmatprep.subr.bf16.mxu0 0
    %121 = vmatpush1.bf16.msra.mxu0 0
    %122 = vmatprep.subr.bf16.mxu0 0
    %123 = vmatpush1.bf16.msra.mxu0 0
    %124 = vmatprep.subr.bf16.mxu0 0
    %125 = vmatpush1.bf16.msra.mxu0 0
    %126 = vmatprep.subr.bf16.mxu0 0
    %127 = vmatpush1.bf16.msra.mxu0 0
    %128 = vmatprep.subr.bf16.mxu0 0
    %129 = vmatpush1.bf16.msra.mxu0 0
    %130 = vmatprep.subr.bf16.mxu0 0
    %131 = vmatpush1.bf16.msra.mxu0 0
    %132 = vmatprep.subr.bf16.mxu0 0
    %133 = vmatpush1.bf16.msra.mxu0 0
    %134 = vmatprep.subr.bf16.mxu0 0
    %135 = vmatpush1.bf16.msra.mxu0 0
    %136 = vmatprep.subr.bf16.mxu0 0
    %137 = vmatpush1.bf16.msra.mxu0 0
    %138 = vmatprep.subr.bf16.mxu0 0
    %139 = vmatpush1.bf16.msra.mxu0 0
    %140 = vmatprep.subr.bf16.mxu0 0
    %141 = vmatpush1.bf16.msra.mxu0 0
    %142 = vmatprep.mubr.bf16.mxu0 0
    %143 = vmatmul.mubr.bf16.gmra.mrb[0].mxu0 %v83
    %v144 = vpop.f32.mrb[0].mxu0
    %v145 = vadd.f32 0.0, %v144
    %v146 = vpop.f32.mrb[0].mxu0
    %v147 = vpop.f32.mrb[0].mxu0
    %v148 = vadd.f32 0.0, %v147
    %v149 = vpop.f32.mrb[0].mxu0
    %150 = vmatprep.mubr.bf16.mxu0 0
    %151 = vmatmul.mubr.bf16.gmra.mrb[0].mxu0 %v86
    %v152 = vpop.f32.mrb[0].mxu0
    %v153 = vadd.f32 0.0, %v152
    %v154 = vpop.f32.mrb[0].mxu0
    %v155 = vpop.f32.mrb[0].mxu0
    %v156 = vadd.f32 0.0, %v155
    %v157 = vpop.f32.mrb[0].mxu0
    %158 = vmatprep.mubr.bf16.mxu0 0
    %159 = vmatmul.mubr.bf16.gmra.mrb[0].mxu0 %v89
    %v160 = vpop.f32.mrb[0].mxu0
    %v161 = vadd.f32 0.0, %v160
    %v162 = vpop.f32.mrb[0].mxu0
    %v163 = vpop.f32.mrb[0].mxu0
    %v164 = vadd.f32 0.0, %v163
    %v165 = vpop.f32.mrb[0].mxu0
    %166 = vmatprep.mubr.bf16.mxu0 0
    %167 = vmatmul.mubr.bf16.gmra.mrb[0].mxu0 %v92
    %v168 = vpop.f32.mrb[0].mxu0
    %v169 = vadd.f32 0.0, %v168
    %v170 = vpop.f32.mrb[0].mxu0
    %v171 = vpop.f32.mrb[0].mxu0
    %v172 = vadd.f32 0.0, %v171
    %v173 = vpop.f32.mrb[0].mxu0
    %174 = vmatprep.mubr.bf16.mxu0 0
    %175 = vmatmul.mubr.bf16.gmra.mrb[0].mxu0 %v95
    %v176 = vpop.f32.mrb[0].mxu0
    %v177 = vadd.f32 0.0, %v176
    %v178 = vpop.f32.mrb[0].mxu0
    %v179 = vpop.f32.mrb[0].mxu0
    %v180 = vadd.f32 0.0, %v179
    %v181 = vpop.f32.mrb[0].mxu0
    %182 = vmatprep.mubr.bf16.mxu0 0
    %183 = vmatmul.mubr.bf16.gmra.mrb[0].mxu0 %v98
    %v184 = vpop.f32.mrb[0].mxu0
    %v185 = vadd.f32 0.0, %v184
    %v186 = vpop.f32.mrb[0].mxu0
    %v187 = vpop.f32.mrb[0].mxu0
    %v188 = vadd.f32 0.0, %v187
    %v189 = vpop.f32.mrb[0].mxu0
    %190 = vmatprep.mubr.bf16.mxu0 0
    %191 = vmatmul.mubr.bf16.gmra.mrb[0].mxu0 %v101
    %v192 = vpop.f32.mrb[0].mxu0
    %v193 = vadd.f32 0.0, %v192
    %v194 = vpop.f32.mrb[0].mxu0
    %v195 = vpop.f32.mrb[0].mxu0
    %v196 = vadd.f32 0.0, %v195
    %v197 = vpop.f32.mrb[0].mxu0
    %198 = vmatprep.mubr.bf16.mxu0 0
    %199 = vmatmul.mubr.bf16.gmra.mrb[0].mxu0 %v104
    %v200 = vpop.f32.mrb[0].mxu0
    %v201 = vadd.f32 0.0, %v200
    %v202 = vpop.f32.mrb[0].mxu0
    %v203 = vpop.f32.mrb[0].mxu0
    %v204 = vadd.f32 0.0, %v203
    %v205 = vpop.f32.mrb[0].mxu0
    %206 = vdwg.mxu0
    %v207 = vld [vmem:[%s2] sm:$0x1]
    %v209 = vlaneseq
    %v210 = vshrl.u32 %v209, 7
    %v211 = vsub.s32 0, %v210
    %v212 = vrot.slane %v207, %v211
    %v214 = vmul.f32 %v145, %v212
    %v215 = vmul.f32 %v148, %v212
    %v216 = vmul.f32 %v153, %v212
    %v217 = vmul.f32 %v156, %v212
    %v218 = vmul.f32 %v161, %v212
    %v219 = vmul.f32 %v164, %v212
    %v220 = vmul.f32 %v169, %v212
    %v221 = vmul.f32 %v172, %v212
    %v222 = vmul.f32 %v177, %v212
    %v223 = vmul.f32 %v180, %v212
    %v224 = vmul.f32 %v185, %v212
    %v225 = vmul.f32 %v188, %v212
    %v226 = vmul.f32 %v193, %v212
    %v227 = vmul.f32 %v196, %v212
    %v228 = vmul.f32 %v201, %v212
    %v229 = vmul.f32 %v204, %v212
    %v230 = vld [vmem:[%s3] sm:$0x1]
    %v232 = vlaneseq
    %v233 = vshrl.u32 %v232, 7
    %v234 = vsub.s32 0, %v233
    %v235 = vrot.slane %v230, %v234
    %v237 = vadd.f32 %v214, %v235
    %v238 = vadd.f32 %v215, %v235
    %v239 = vadd.f32 %v216, %v235
    %v240 = vadd.f32 %v217, %v235
    %v241 = vadd.f32 %v218, %v235
    %v242 = vadd.f32 %v219, %v235
    %v243 = vadd.f32 %v220, %v235
    %v244 = vadd.f32 %v221, %v235
    %v245 = vadd.f32 %v222, %v235
    %v246 = vadd.f32 %v223, %v235
    %v247 = vadd.f32 %v224, %v235
    %v248 = vadd.f32 %v225, %v235
    %v249 = vadd.f32 %v226, %v235
    %v250 = vadd.f32 %v227, %v235
    %v251 = vadd.f32 %v228, %v235
    %v252 = vadd.f32 %v229, %v235
    %v253 = vmax.f32 %v237, 0.0
    %v254 = vmax.f32 %v238, 0.0
    %v255 = vmax.f32 %v239, 0.0
    %v256 = vmax.f32 %v240, 0.0
    %v257 = vmax.f32 %v241, 0.0
    %v258 = vmax.f32 %v242, 0.0
    %v259 = vmax.f32 %v243, 0.0
    %v260 = vmax.f32 %v244, 0.0
    %v261 = vmax.f32 %v245, 0.0
    %v262 = vmax.f32 %v246, 0.0
    %v263 = vmax.f32 %v247, 0.0
    %v264 = vmax.f32 %v248, 0.0
    %v265 = vmax.f32 %v249, 0.0
    %v266 = vmax.f32 %v250, 0.0
    %v267 = vmax.f32 %v251, 0.0
    %v268 = vmax.f32 %v252, 0.0
    %v269 = vpack.c.bf16 %v254, %v253
    %v270 = vpack.c.bf16 %v256, %v255
    %v271 = vpack.c.bf16 %v258, %v257
    %v272 = vpack.c.bf16 %v260, %v259
    %v273 = vpack.c.bf16 %v262, %v261
    %v274 = vpack.c.bf16 %v264, %v263
    %v275 = vpack.c.bf16 %v266, %v265
    %v276 = vpack.c.bf16 %v268, %v267
    %v277 = vld [vmem:[%s4] sm:$0xf]
    %v278 = vld [vmem:[%s4 + $0x4] sm:$0xf]
    %v279 = vld [vmem:[%s4 + $0x8] sm:$0xf]
    %v280 = vld [vmem:[%s4 + $0xc] sm:$0xf]
    %v281 = vld [vmem:[%s4 + $0x10] sm:$0xf]
    %v282 = vld [vmem:[%s4 + $0x14] sm:$0xf]
    %v283 = vld [vmem:[%s4 + $0x18] sm:$0xf]
    %v284 = vld [vmem:[%s4 + $0x1c] sm:$0xf]
    %v293 = vunpack.c.l.b16 %v277
    %v294 = vunpack.c.l.b16 %v278
    %v295 = vunpack.c.l.b16 %v279
    %v296 = vunpack.c.l.b16 %v280
    %v297 = vunpack.c.l.b16 %v281
    %v298 = vunpack.c.l.b16 %v282
    %v299 = vunpack.c.l.b16 %v283
    %v300 = vunpack.c.l.b16 %v284
    %v301 = vpack.c.b16 %v294, %v293
    %v302 = vpack.c.b16 %v296, %v295
    %v303 = vpack.c.b16 %v298, %v297
    %v304 = vpack.c.b16 %v300, %v299
    %vm309 = vcmask 523264
    %v311 = vsel %vm309, %v269, 0
    %v314 = vsel %vm309, %v270, 0
    %v317 = vsel %vm309, %v271, 0
    %v320 = vsel %vm309, %v272, 0
    %v323 = vsel %vm309, %v273, 0
    %v326 = vsel %vm309, %v274, 0
    %v329 = vsel %vm309, %v275, 0
    %v332 = vsel %vm309, %v276, 0
    %334 = vmatprep.subr.bf16.mxu0 0
    %335 = vmatpush1.bf16.msra.mxu0 %v301
    %336 = vmatprep.subr.bf16.mxu0 0
    %337 = vmatpush1.bf16.msra.mxu0 %v302
    %338 = vmatprep.subr.bf16.mxu0 0
    %339 = vmatpush1.bf16.msra.mxu0 %v303
    %340 = vmatprep.subr.bf16.mxu0 0
    %341 = vmatpush1.bf16.msra.mxu0 %v304
    %342 = vmatprep.subr.bf16.mxu0 0
    %343 = vmatpush1.bf16.msra.mxu0 0
    %344 = vmatprep.subr.bf16.mxu0 0
    %345 = vmatpush1.bf16.msra.mxu0 0
    %346 = vmatprep.subr.bf16.mxu0 0
    %347 = vmatpush1.bf16.msra.mxu0 0
    %348 = vmatprep.subr.bf16.mxu0 0
    %349 = vmatpush1.bf16.msra.mxu0 0
    %350 = vmatprep.subr.bf16.mxu0 0
    %351 = vmatpush1.bf16.msra.mxu0 0
    %352 = vmatprep.subr.bf16.mxu0 0
    %353 = vmatpush1.bf16.msra.mxu0 0
    %354 = vmatprep.subr.bf16.mxu0 0
    %355 = vmatpush1.bf16.msra.mxu0 0
    %356 = vmatprep.subr.bf16.mxu0 0
    %357 = vmatpush1.bf16.msra.mxu0 0
    %358 = vmatprep.subr.bf16.mxu0 0
    %359 = vmatpush1.bf16.msra.mxu0 0
    %360 = vmatprep.subr.bf16.mxu0 0
    %361 = vmatpush1.bf16.msra.mxu0 0
    %362 = vmatprep.subr.bf16.mxu0 0
    %363 = vmatpush1.bf16.msra.mxu0 0
    %364 = vmatprep.subr.bf16.mxu0 0
    %365 = vmatpush1.bf16.msra.mxu0 0
    %366 = vmatprep.mubr.bf16.mxu0 0
    %367 = vmatmul.mubr.bf16.gmra.mrb[0].mxu0 %v311
    %v368 = vpop.f32.mrb[0].mxu0
    %v369 = vadd.f32 0.0, %v368
    %v370 = vpop.f32.mrb[0].mxu0
    %v371 = vpop.f32.mrb[0].mxu0
    %v372 = vadd.f32 0.0, %v371
    %v373 = vpop.f32.mrb[0].mxu0
    %374 = vmatprep.mubr.bf16.mxu0 0
    %375 = vmatmul.mubr.bf16.gmra.mrb[0].mxu0 %v314
    %v376 = vpop.f32.mrb[0].mxu0
    %v377 = vadd.f32 0.0, %v376
    %v378 = vpop.f32.mrb[0].mxu0
    %v379 = vpop.f32.mrb[0].mxu0
    %v380 = vadd.f32 0.0, %v379
    %v381 = vpop.f32.mrb[0].mxu0
    %382 = vmatprep.mubr.bf16.mxu0 0
    %383 = vmatmul.mubr.bf16.gmra.mrb[0].mxu0 %v317
    %v384 = vpop.f32.mrb[0].mxu0
    %v385 = vadd.f32 0.0, %v384
    %v386 = vpop.f32.mrb[0].mxu0
    %v387 = vpop.f32.mrb[0].mxu0
    %v388 = vadd.f32 0.0, %v387
    %v389 = vpop.f32.mrb[0].mxu0
    %390 = vmatprep.mubr.bf16.mxu0 0
    %391 = vmatmul.mubr.bf16.gmra.mrb[0].mxu0 %v320
    %v392 = vpop.f32.mrb[0].mxu0
    %v393 = vadd.f32 0.0, %v392
    %v394 = vpop.f32.mrb[0].mxu0
    %v395 = vpop.f32.mrb[0].mxu0
    %v396 = vadd.f32 0.0, %v395
    %v397 = vpop.f32.mrb[0].mxu0
    %398 = vmatprep.mubr.bf16.mxu0 0
    %399 = vmatmul.mubr.bf16.gmra.mrb[0].mxu0 %v323
    %v400 = vpop.f32.mrb[0].mxu0
    %v401 = vadd.f32 0.0, %v400
    %v402 = vpop.f32.mrb[0].mxu0
    %v403 = vpop.f32.mrb[0].mxu0
    %v404 = vadd.f32 0.0, %v403
    %v405 = vpop.f32.mrb[0].mxu0
    %406 = vmatprep.mubr.bf16.mxu0 0
    %407 = vmatmul.mubr.bf16.gmra.mrb[0].mxu0 %v326
    %v408 = vpop.f32.mrb[0].mxu0
    %v409 = vadd.f32 0.0, %v408
    %v410 = vpop.f32.mrb[0].mxu0
    %v411 = vpop.f32.mrb[0].mxu0
    %v412 = vadd.f32 0.0, %v411
    %v413 = vpop.f32.mrb[0].mxu0
    %414 = vmatprep.mubr.bf16.mxu0 0
    %415 = vmatmul.mubr.bf16.gmra.mrb[0].mxu0 %v329
    %v416 = vpop.f32.mrb[0].mxu0
    %v417 = vadd.f32 0.0, %v416
    %v418 = vpop.f32.mrb[0].mxu0
    %v419 = vpop.f32.mrb[0].mxu0
    %v420 = vadd.f32 0.0, %v419
    %v421 = vpop.f32.mrb[0].mxu0
    %422 = vmatprep.mubr.bf16.mxu0 0
    %423 = vmatmul.mubr.bf16.gmra.mrb[0].mxu0 %v332
    %v424 = vpop.f32.mrb[0].mxu0
    %v425 = vadd.f32 0.0, %v424
    %v426 = vpop.f32.mrb[0].mxu0
    %v427 = vpop.f32.mrb[0].mxu0
    %v428 = vadd.f32 0.0, %v427
    %v429 = vpop.f32.mrb[0].mxu0
    %430 = vdwg.mxu0
    %v431 = vld [vmem:[%s5] sm:$0x1]
    %v433 = vlaneseq
    %v434 = vshrl.u32 %v433, 7
    %v435 = vsub.s32 0, %v434
    %v436 = vrot.slane %v431, %v435
    %v438 = vmul.f32 %v369, %v436
    %v439 = vmul.f32 %v372, %v436
    %v440 = vmul.f32 %v377, %v436
    %v441 = vmul.f32 %v380, %v436
    %v442 = vmul.f32 %v385, %v436
    %v443 = vmul.f32 %v388, %v436
    %v444 = vmul.f32 %v393, %v436
    %v445 = vmul.f32 %v396, %v436
    %v446 = vmul.f32 %v401, %v436
    %v447 = vmul.f32 %v404, %v436
    %v448 = vmul.f32 %v409, %v436
    %v449 = vmul.f32 %v412, %v436
    %v450 = vmul.f32 %v417, %v436
    %v451 = vmul.f32 %v420, %v436
    %v452 = vmul.f32 %v425, %v436
    %v453 = vmul.f32 %v428, %v436
    %v454 = vld [vmem:[%s6] sm:$0x1]
    %v456 = vlaneseq
    %v457 = vshrl.u32 %v456, 7
    %v458 = vsub.s32 0, %v457
    %v459 = vrot.slane %v454, %v458
    %v461 = vadd.f32 %v438, %v459
    %v462 = vadd.f32 %v439, %v459
    %v463 = vadd.f32 %v440, %v459
    %v464 = vadd.f32 %v441, %v459
    %v465 = vadd.f32 %v442, %v459
    %v466 = vadd.f32 %v443, %v459
    %v467 = vadd.f32 %v444, %v459
    %v468 = vadd.f32 %v445, %v459
    %v469 = vadd.f32 %v446, %v459
    %v470 = vadd.f32 %v447, %v459
    %v471 = vadd.f32 %v448, %v459
    %v472 = vadd.f32 %v449, %v459
    %v473 = vadd.f32 %v450, %v459
    %v474 = vadd.f32 %v451, %v459
    %v475 = vadd.f32 %v452, %v459
    %v476 = vadd.f32 %v453, %v459
    %v477 = vmax.f32 %v461, 0.0
    %v478 = vmax.f32 %v462, 0.0
    %v479 = vmax.f32 %v463, 0.0
    %v480 = vmax.f32 %v464, 0.0
    %v481 = vmax.f32 %v465, 0.0
    %v482 = vmax.f32 %v466, 0.0
    %v483 = vmax.f32 %v467, 0.0
    %v484 = vmax.f32 %v468, 0.0
    %v485 = vmax.f32 %v469, 0.0
    %v486 = vmax.f32 %v470, 0.0
    %v487 = vmax.f32 %v471, 0.0
    %v488 = vmax.f32 %v472, 0.0
    %v489 = vmax.f32 %v473, 0.0
    %v490 = vmax.f32 %v474, 0.0
    %v491 = vmax.f32 %v475, 0.0
    %v492 = vmax.f32 %v476, 0.0
    %v493 = vpack.c.bf16 %v478, %v477
    %v494 = vpack.c.bf16 %v480, %v479
    %v495 = vpack.c.bf16 %v482, %v481
    %v496 = vpack.c.bf16 %v484, %v483
    %v497 = vpack.c.bf16 %v486, %v485
    %v498 = vpack.c.bf16 %v488, %v487
    %v499 = vpack.c.bf16 %v490, %v489
    %v500 = vpack.c.bf16 %v492, %v491
    %v501 = vld [vmem:[%s7] sm:$0xf]
    %v502 = vld [vmem:[%s7 + $0x4] sm:$0xf]
    %v503 = vld [vmem:[%s7 + $0x8] sm:$0xf]
    %v504 = vld [vmem:[%s7 + $0xc] sm:$0xf]
    %v505 = vld [vmem:[%s7 + $0x10] sm:$0xf]
    %v506 = vld [vmem:[%s7 + $0x14] sm:$0xf]
    %v507 = vld [vmem:[%s7 + $0x18] sm:$0xf]
    %v508 = vld [vmem:[%s7 + $0x1c] sm:$0xf]
    %v517 = vunpack.c.l.b16 %v501
    %v518 = vunpack.c.l.b16 %v502
    %v519 = vunpack.c.l.b16 %v503
    %v520 = vunpack.c.l.b16 %v504
    %v521 = vunpack.c.l.b16 %v505
    %v522 = vunpack.c.l.b16 %v506
    %v523 = vunpack.c.l.b16 %v507
    %v524 = vunpack.c.l.b16 %v508
    %v525 = vpack.c.b16 %v518, %v517
    %v526 = vpack.c.b16 %v520, %v519
    %v527 = vpack.c.b16 %v522, %v521
    %v528 = vpack.c.b16 %v524, %v523
    %v534 = vsel %vm309, %v493, 0
    %v537 = vsel %vm309, %v494, 0
    %v540 = vsel %vm309, %v495, 0
    %v543 = vsel %vm309, %v496, 0
    %v546 = vsel %vm309, %v497, 0
    %v549 = vsel %vm309, %v498, 0
    %v552 = vsel %vm309, %v499, 0
    %v555 = vsel %vm309, %v500, 0
    %557 = vmatprep.subr.bf16.mxu0 0
    %558 = vmatpush1.bf16.msra.mxu0 %v525
    %559 = vmatprep.subr.bf16.mxu0 0
    %560 = vmatpush1.bf16.msra.mxu0 %v526
    %561 = vmatprep.subr.bf16.mxu0 0
    %562 = vmatpush1.bf16.msra.mxu0 %v527
    %563 = vmatprep.subr.bf16.mxu0 0
    %564 = vmatpush1.bf16.msra.mxu0 %v528
    %565 = vmatprep.subr.bf16.mxu0 0
    %566 = vmatpush1.bf16.msra.mxu0 0
    %567 = vmatprep.subr.bf16.mxu0 0
    %568 = vmatpush1.bf16.msra.mxu0 0
    %569 = vmatprep.subr.bf16.mxu0 0
    %570 = vmatpush1.bf16.msra.mxu0 0
    %571 = vmatprep.subr.bf16.mxu0 0
    %572 = vmatpush1.bf16.msra.mxu0 0
    %573 = vmatprep.subr.bf16.mxu0 0
    %574 = vmatpush1.bf16.msra.mxu0 0
    %575 = vmatprep.subr.bf16.mxu0 0
    %576 = vmatpush1.bf16.msra.mxu0 0
    %577 = vmatprep.subr.bf16.mxu0 0
    %578 = vmatpush1.bf16.msra.mxu0 0
    %579 = vmatprep.subr.bf16.mxu0 0
    %580 = vmatpush1.bf16.msra.mxu0 0
    %581 = vmatprep.subr.bf16.mxu0 0
    %582 = vmatpush1.bf16.msra.mxu0 0
    %583 = vmatprep.subr.bf16.mxu0 0
    %584 = vmatpush1.bf16.msra.mxu0 0
    %585 = vmatprep.subr.bf16.mxu0 0
    %586 = vmatpush1.bf16.msra.mxu0 0
    %587 = vmatprep.subr.bf16.mxu0 0
    %588 = vmatpush1.bf16.msra.mxu0 0
    %589 = vmatprep.mubr.bf16.mxu0 0
    %590 = vmatmul.mubr.bf16.gmra.mrb[0].mxu0 %v534
    %v591 = vpop.f32.mrb[0].mxu0
    %v592 = vadd.f32 0.0, %v591
    %v593 = vpop.f32.mrb[0].mxu0
    %v594 = vpop.f32.mrb[0].mxu0
    %v595 = vadd.f32 0.0, %v594
    %v596 = vpop.f32.mrb[0].mxu0
    %597 = vmatprep.mubr.bf16.mxu0 0
    %598 = vmatmul.mubr.bf16.gmra.mrb[0].mxu0 %v537
    %v599 = vpop.f32.mrb[0].mxu0
    %v600 = vadd.f32 0.0, %v599
    %v601 = vpop.f32.mrb[0].mxu0
    %v602 = vpop.f32.mrb[0].mxu0
    %v603 = vadd.f32 0.0, %v602
    %v604 = vpop.f32.mrb[0].mxu0
    %605 = vmatprep.mubr.bf16.mxu0 0
    %606 = vmatmul.mubr.bf16.gmra.mrb[0].mxu0 %v540
    %v607 = vpop.f32.mrb[0].mxu0
    %v608 = vadd.f32 0.0, %v607
    %v609 = vpop.f32.mrb[0].mxu0
    %v610 = vpop.f32.mrb[0].mxu0
    %v611 = vadd.f32 0.0, %v610
    %v612 = vpop.f32.mrb[0].mxu0
    %613 = vmatprep.mubr.bf16.mxu0 0
    %614 = vmatmul.mubr.bf16.gmra.mrb[0].mxu0 %v543
    %v615 = vpop.f32.mrb[0].mxu0
    %v616 = vadd.f32 0.0, %v615
    %v617 = vpop.f32.mrb[0].mxu0
    %v618 = vpop.f32.mrb[0].mxu0
    %v619 = vadd.f32 0.0, %v618
    %v620 = vpop.f32.mrb[0].mxu0
    %621 = vmatprep.mubr.bf16.mxu0 0
    %622 = vmatmul.mubr.bf16.gmra.mrb[0].mxu0 %v546
    %v623 = vpop.f32.mrb[0].mxu0
    %v624 = vadd.f32 0.0, %v623
    %v625 = vpop.f32.mrb[0].mxu0
    %v626 = vpop.f32.mrb[0].mxu0
    %v627 = vadd.f32 0.0, %v626
    %v628 = vpop.f32.mrb[0].mxu0
    %629 = vmatprep.mubr.bf16.mxu0 0
    %630 = vmatmul.mubr.bf16.gmra.mrb[0].mxu0 %v549
    %v631 = vpop.f32.mrb[0].mxu0
    %v632 = vadd.f32 0.0, %v631
    %v633 = vpop.f32.mrb[0].mxu0
    %v634 = vpop.f32.mrb[0].mxu0
    %v635 = vadd.f32 0.0, %v634
    %v636 = vpop.f32.mrb[0].mxu0
    %637 = vmatprep.mubr.bf16.mxu0 0
    %638 = vmatmul.mubr.bf16.gmra.mrb[0].mxu0 %v552
    %v639 = vpop.f32.mrb[0].mxu0
    %v640 = vadd.f32 0.0, %v639
    %v641 = vpop.f32.mrb[0].mxu0
    %v642 = vpop.f32.mrb[0].mxu0
    %v643 = vadd.f32 0.0, %v642
    %v644 = vpop.f32.mrb[0].mxu0
    %645 = vmatprep.mubr.bf16.mxu0 0
    %646 = vmatmul.mubr.bf16.gmra.mrb[0].mxu0 %v555
    %v647 = vpop.f32.mrb[0].mxu0
    %v648 = vadd.f32 0.0, %v647
    %v649 = vpop.f32.mrb[0].mxu0
    %v650 = vpop.f32.mrb[0].mxu0
    %v651 = vadd.f32 0.0, %v650
    %v652 = vpop.f32.mrb[0].mxu0
    %653 = vdwg.mxu0
    %v654 = vld [vmem:[%s8] sm:$0x1]
    %v656 = vlaneseq
    %v657 = vshrl.u32 %v656, 7
    %v658 = vsub.s32 0, %v657
    %v659 = vrot.slane %v654, %v658
    %v661 = vmul.f32 %v592, %v659
    %v662 = vmul.f32 %v595, %v659
    %v663 = vmul.f32 %v600, %v659
    %v664 = vmul.f32 %v603, %v659
    %v665 = vmul.f32 %v608, %v659
    %v666 = vmul.f32 %v611, %v659
    %v667 = vmul.f32 %v616, %v659
    %v668 = vmul.f32 %v619, %v659
    %v669 = vmul.f32 %v624, %v659
    %v670 = vmul.f32 %v627, %v659
    %v671 = vmul.f32 %v632, %v659
    %v672 = vmul.f32 %v635, %v659
    %v673 = vmul.f32 %v640, %v659
    %v674 = vmul.f32 %v643, %v659
    %v675 = vmul.f32 %v648, %v659
    %v676 = vmul.f32 %v651, %v659
    %v677 = vld [vmem:[%s9] sm:$0x1]
    %v679 = vlaneseq
    %v680 = vshrl.u32 %v679, 7
    %v681 = vsub.s32 0, %v680
    %v682 = vrot.slane %v677, %v681
    %v684 = vadd.f32 %v661, %v682
    %v685 = vadd.f32 %v662, %v682
    %v686 = vadd.f32 %v663, %v682
    %v687 = vadd.f32 %v664, %v682
    %v688 = vadd.f32 %v665, %v682
    %v689 = vadd.f32 %v666, %v682
    %v690 = vadd.f32 %v667, %v682
    %v691 = vadd.f32 %v668, %v682
    %v692 = vadd.f32 %v669, %v682
    %v693 = vadd.f32 %v670, %v682
    %v694 = vadd.f32 %v671, %v682
    %v695 = vadd.f32 %v672, %v682
    %v696 = vadd.f32 %v673, %v682
    %v697 = vadd.f32 %v674, %v682
    %v698 = vadd.f32 %v675, %v682
    %v699 = vadd.f32 %v676, %v682
    %v700 = vmax.f32 %v684, 0.0
    %v701 = vmax.f32 %v685, 0.0
    %v702 = vmax.f32 %v686, 0.0
    %v703 = vmax.f32 %v687, 0.0
    %v704 = vmax.f32 %v688, 0.0
    %v705 = vmax.f32 %v689, 0.0
    %v706 = vmax.f32 %v690, 0.0
    %v707 = vmax.f32 %v691, 0.0
    %v708 = vmax.f32 %v692, 0.0
    %v709 = vmax.f32 %v693, 0.0
    %v710 = vmax.f32 %v694, 0.0
    %v711 = vmax.f32 %v695, 0.0
    %v712 = vmax.f32 %v696, 0.0
    %v713 = vmax.f32 %v697, 0.0
    %v714 = vmax.f32 %v698, 0.0
    %v715 = vmax.f32 %v699, 0.0
    %716 = vst [vmem:[#allocation2] sm:$0xff] %v700
    %717 = vst [vmem:[#allocation2 + $0x8] sm:$0xff] %v701
    %718 = vst [vmem:[#allocation2 + $0x10] sm:$0xff] %v702
    %719 = vst [vmem:[#allocation2 + $0x18] sm:$0xff] %v703
    %720 = vst [vmem:[#allocation2 + $0x20] sm:$0xff] %v704
    %721 = vst [vmem:[#allocation2 + $0x28] sm:$0xff] %v705
    %722 = vst [vmem:[#allocation2 + $0x30] sm:$0xff] %v706
    %723 = vst [vmem:[#allocation2 + $0x38] sm:$0xff] %v707
    %724 = vst [vmem:[#allocation2 + $0x40] sm:$0xff] %v708
    %725 = vst [vmem:[#allocation2 + $0x48] sm:$0xff] %v709
    %726 = vst [vmem:[#allocation2 + $0x50] sm:$0xff] %v710
    %727 = vst [vmem:[#allocation2 + $0x58] sm:$0xff] %v711
    %728 = vst [vmem:[#allocation2 + $0x60] sm:$0xff] %v712
    %729 = vst [vmem:[#allocation2 + $0x68] sm:$0xff] %v713
    %730 = vst [vmem:[#allocation2 + $0x70] sm:$0xff] %v714
    %731 = vst [vmem:[#allocation2 + $0x78] sm:$0xff] %v715
    // Predicated region
    $region42: #{tpu_custom_call.1} parent=1 // pred_check
      _
    $region43: #{tpu_custom_call.1} parent=1 // pred_check_branch
      %733 = sbr.rel (0) target = $region45
    $region44: #{tpu_custom_call.1} parent=1 // pred_region
      %s735 = ssub.s32 2048, 2048
      %736 = vsyncadd [#allocation3], %s735
      %s737 = sshll.u32 [#allocation2], 4
      %s738 = int_to_ptr.vmem [resolvable:$true] %s737
      %743 = dma.vmem_to_hbm [thread:$0]  %s738, 2048, %s10, [#allocation3], 128, 128, 8
    $region45: #{tpu_custom_call.1} parent=1 // pred_fallthru
      _
    // Predicated region
    $region46: #{tpu_custom_call.1} parent=1 // pred_check
      _
    $region47: #{tpu_custom_call.1} parent=1 // pred_check_branch
      %745 = sbr.rel (0) target = $region49
    $region48: #{tpu_custom_call.1} parent=1 // pred_region
      %746 = dma.done [#allocation3], 2048
    $region49: #{tpu_custom_call.1} parent=1 // pred_fallthru
      _
    %747 = vsyncpa [#allocation3], 1

</llo_original>
